<compile_context>
chip_gen: v5e
topology: v5e:2x2
jax: 0.10.0
libtpu: 0.0.40
codegen_flags: <defaults>
</compile_context>

<pallas_src>
import math
import jax
import jax.numpy as jnp
from jax import lax
from jax.experimental import pallas as pl
from jax.experimental.pallas import tpu as pltpu


def _round_up(a: int, b: int) -> int:
    return ((a + b - 1) // b) * b


def _largest_aligned_divisor(n: int, align: int, cap: int) -> int:
    """Largest d <= cap with d % align == 0 and n % d == 0 (n % align == 0)."""
    best = align
    d = align
    limit = min(n, cap)
    while d <= limit:
        if n % d == 0:
            best = d
        d += align
    return best


# x(tm, tk) . w(tn, tk)^T -> (tm, tn): contract last dim of both operands.
_DN = (((1,), (1,)), ((), ()))


def _matmul_kernel_single_k(x_ref, w_ref, o_ref):
    o_ref[...] = lax.dot_general(
        x_ref[...], w_ref[...], dimension_numbers=_DN,
        preferred_element_type=jnp.float32,
    ).astype(o_ref.dtype)


def _matmul_kernel_multi_k(x_ref, w_ref, o_ref, acc_ref):
    k = pl.program_id(2)

    @pl.when(k == 0)
    def _():
        acc_ref[...] = jnp.zeros_like(acc_ref)

    acc_ref[...] += lax.dot_general(
        x_ref[...], w_ref[...], dimension_numbers=_DN,
        preferred_element_type=jnp.float32,
    )

    @pl.when(k == pl.num_programs(2) - 1)
    def _():
        o_ref[...] = acc_ref[...].astype(o_ref.dtype)


def _vmem_cap_bytes() -> int:
    """Generation-aware VMEM cap: 3/4 of physical (48 MiB on v7x, 96 MiB on v5e/v6e)."""
    try:
        phys = pltpu.get_tpu_info().vmem_capacity_bytes
    except Exception:
        phys = 64 << 20  # conservative fallback (v7x-sized)
    return max(32 << 20, (phys // 4) * 3)


def query_forward(x, weight, *, tm_max=1024, tn_max=512, tk_max=2048):
    """y = x @ weight^T  (bias-free Linear, PyTorch nn.Linear layout).

    x:      (..., dim_embed)
    weight: (dim_hidden, dim_embed)   -- native nn.Linear layout, never copied.
    returns (..., dim_hidden) in x.dtype.
    """
    *lead, E = x.shape
    Hdim, E_w = weight.shape
    assert E == E_w, "dim_embed mismatch between x and weight"

    M = 1
    for d in lead:
        M *= d
    x2d = x.reshape(M, E)

    # ---------------- tile / padding plan (pads only when needed) ----------------
    # Row (M) axis: sublane dim of x and output.
    if M <= tm_max:
        tm, Mp = M, M
    else:
        Mp = _round_up(M, 8)
        tm = _largest_aligned_divisor(Mp, 8, tm_max)

    # Output (Hdim) axis: lane dim of output, sublane dim of weight.
    if Hdim <= 2 * tn_max:                    # one full-width block, no pad
        tn, Hp = Hdim, Hdim
    elif Hdim % 128 == 0:                     # split without padding
        Hp = Hdim
        tn = _largest_aligned_divisor(Hp, 128, tn_max)
    else:                                     # rare: pad up to a 256-multiple
        Hp = _round_up(Hdim, 256)
        tn = _largest_aligned_divisor(Hp, 128, tn_max)

    # Contraction (E) axis: lane dim of both x and weight.
    if E <= tk_max:                           # single-k fast path, no pad
        tk, Ep = E, E
    elif E % 128 == 0:
        Ep = E
        tk = _largest_aligned_divisor(Ep, 128, tk_max)
    else:
        Ep = _round_up(E, 256)
        tk = _largest_aligned_divisor(Ep, 128, tk_max)

    gm, gn, gk = Mp // tm, Hp // tn, Ep // tk
    single_k = gk == 1

    # v7x: make sure at least one "parallel" axis has >=2 iterations so both
    # TensorCores get work; keep each half >=256 lanes wide for the 256x256 MXU.
    if gm == 1 and gn == 1 and Hp >= 512 and Hp % 256 == 0:
        tn = Hp // 2
        gn = 2

    # ---------------- conditional zero padding ----------------
    pad_m, pad_n, pad_k = Mp - M, Hp - Hdim, Ep - E
    xp = jnp.pad(x2d, ((0, pad_m), (0, pad_k))) if (pad_m or pad_k) else x2d
    wp = jnp.pad(weight, ((0, pad_n), (0, pad_k))) if (pad_n or pad_k) else weight

    out_dtype = x.dtype
    in_item = jnp.dtype(xp.dtype).itemsize
    out_item = jnp.dtype(out_dtype).itemsize

    # Deeper weight buffering only for the memory-bound small-M case and only
    # when the weight block actually changes across grid steps.
    w_buffers = 3 if (M <= 256 and gn * gk >= 2) else None

    if single_k:
        grid = (gm, gn)
        x_spec = pl.BlockSpec((tm, Ep), lambda i, j: (i, 0))
        w_block_shape, w_index_map = (tn, Ep), (lambda i, j: (j, 0))
        out_specs = pl.BlockSpec((tm, tn), lambda i, j: (i, j))
        scratch_shapes = []
        dim_sem = ("parallel", "parallel")
        kernel = _matmul_kernel_single_k
        acc_bytes = 0
        kk = Ep
    else:
        grid = (gm, gn, gk)
        x_spec = pl.BlockSpec((tm, tk), lambda i, j, k: (i, k))
        w_block_shape, w_index_map = (tn, tk), (lambda i, j, k: (j, k))
        out_specs = pl.BlockSpec((tm, tn), lambda i, j, k: (i, j))
        scratch_shapes = [pltpu.VMEM((tm, tn), jnp.float32)]
        dim_sem = ("parallel", "parallel", "arbitrary")
        kernel = _matmul_kernel_multi_k
        acc_bytes = tm * tn * 4
        kk = tk

    n_w_buf = w_buffers if w_buffers is not None else 2
    needed = (2 * tm * kk + n_w_buf * tn * kk) * in_item \
             + 2 * tm * tn * out_item + acc_bytes
    vmem_limit = min(max(needed + (8 << 20), 32 << 20), _vmem_cap_bytes())

    cost = pl.CostEstimate(
        flops=2 * M * E * Hdim,
        transcendentals=0,
        bytes_accessed=in_item * (M * E + Hdim * E) + out_item * M * Hdim,
    )

    def _call(w_spec):
        return pl.pallas_call(
            kernel,
            out_shape=jax.ShapeDtypeStruct((Mp, Hp), out_dtype),
            grid_spec=pltpu.PrefetchScalarGridSpec(
                num_scalar_prefetch=0,
                grid=grid,
                in_specs=[x_spec, w_spec],
                out_specs=out_specs,
                scratch_shapes=scratch_shapes,
            ),
            compiler_params=pltpu.CompilerParams(
                dimension_semantics=dim_sem,
                vmem_limit_bytes=vmem_limit,
            ),
            cost_estimate=cost,
        )(xp, wp)

    if w_buffers is not None:
        try:  # deeper weight pipelining for the memory-bound small-M case
            out = _call(pl.BlockSpec(w_block_shape, w_index_map,
                                     pipeline_mode=pl.Buffered(w_buffers)))
        except Exception:  # older Pallas without pipeline_mode -> default 2-deep
            out = _call(pl.BlockSpec(w_block_shape, w_index_map))
    else:
        out = _call(pl.BlockSpec(w_block_shape, w_index_map))

    y = out
    if pad_n:
        y = y[:, :Hdim]
    if pad_m:
        y = y[:M]
    return y.reshape(*lead, Hdim)


def query_reference(x, weight):
    return jnp.einsum("...e,he->...h", x, weight)


if __name__ == "__main__":
    # Small config consistent with the module: dim_embed=32, dim_hidden=64.
    B, S, dim_embed, dim_hidden = 2, 8, 32, 64

    key = jax.random.PRNGKey(0)
    kx, kw, kx2, kw2 = jax.random.split(key, 4)

    x = jax.random.normal(kx, (B, S, dim_embed), dtype=jnp.float32)
    # nn.Linear init: uniform(-1/sqrt(fan_in), +1/sqrt(fan_in)), weight (out, in).
    bound = 1.0 / math.sqrt(dim_embed)
    weight = jax.random.uniform(
        kw, (dim_hidden, dim_embed), jnp.float32, -bound, bound
    )

    y_ref = query_reference(x, weight)

    # 1) f32 path, single-k fast kernel (no pads, no accumulator scratch).
    y = jax.block_until_ready(query_forward(x, weight))
    assert y.shape == (B, S, dim_hidden)
    assert jnp.allclose(y, y_ref, atol=1e-5, rtol=1e-5), "f32 mismatch vs. reference"

    # 2) bf16 operand path (full-rate MXU, f32 accumulation) - looser tolerance.
    y_bf16 = jax.block_until_ready(
        query_forward(x.astype(jnp.bfloat16), weight.astype(jnp.bfloat16))
    )
    assert jnp.allclose(
        y_bf16.astype(jnp.float32), y_ref, atol=5e-2, rtol=5e-2
    ), "bf16 mismatch vs. reference"

    # 3) Multi-k accumulator path (force several k-steps with a small tk_max).
    E2 = 512
    x2 = jax.random.normal(kx2, (B, S, E2), dtype=jnp.float32)
    bound2 = 1.0 / math.sqrt(E2)
    weight2 = jax.random.uniform(
        kw2, (dim_hidden, E2), jnp.float32, -bound2, bound2
    )
    y2_ref = query_reference(x2, weight2)
    y2 = jax.block_until_ready(query_forward(x2, weight2, tk_max=128))
    assert y2.shape == (B, S, dim_hidden)
    assert jnp.allclose(y2, y2_ref, atol=2e-4, rtol=2e-4), "multi-k mismatch vs. reference"

    print("KERNEL_OK")
</pallas_src>

<mosaic_0001>
module attributes {stable_mosaic.version = 11 : i64} {
  func.func @_matmul_kernel_single_k(%arg0: i32, %arg1: i32, %arg2: memref<16x32xf32, #tpu.memory_space<vmem>>, %arg3: memref<64x32xf32, #tpu.memory_space<vmem>>, %arg4: memref<16x64xf32, #tpu.memory_space<vmem>>) attributes {dimension_semantics = [#tpu.dimension_semantics<parallel>, #tpu.dimension_semantics<parallel>], iteration_bounds = array<i64: 1, 1>, scalar_prefetch = 0 : i64, scratch_operands = 0 : i64, tpu.core_type = #tpu.core_type<tc>, window_params = [{transform_indices = @transform_0, window_bounds = array<i64: 16, 32>}, {transform_indices = @transform_1, window_bounds = array<i64: 64, 32>}, {transform_indices = @transform_2, window_bounds = array<i64: 16, 64>}]} {
    %c0 = arith.constant 0 : index
    %c0_0 = arith.constant 0 : index
    %0 = vector.load %arg2[%c0, %c0_0] : memref<16x32xf32, #tpu.memory_space<vmem>>, vector<16x32xf32>
    %c0_1 = arith.constant 0 : index
    %c0_2 = arith.constant 0 : index
    %1 = vector.load %arg3[%c0_1, %c0_2] : memref<64x32xf32, #tpu.memory_space<vmem>>, vector<64x32xf32>
    %cst = arith.constant dense<0.000000e+00> : vector<16x64xf32>
    %2 = tpu.matmul %0, %1, %cst {dimension_numbers = #tpu.dot_dimension_numbers<[1], [1], [0], [0], [0, 0, 1, 0], [], []>} : vector<16x32xf32>, vector<64x32xf32>, vector<16x64xf32> -> vector<16x64xf32>
    %c0_3 = arith.constant 0 : index
    %c0_4 = arith.constant 0 : index
    %3 = vector.load %arg4[%c0_3, %c0_4] : memref<16x64xf32, #tpu.memory_space<vmem>>, vector<16x64xf32>
    tpu.vector_store %arg4[%c0_3, %c0_4], %2 {strides = array<i32>} : memref<16x64xf32, #tpu.memory_space<vmem>>, vector<16x64xf32>,
    return
  }
  func.func @transform_0(%arg0: i32, %arg1: i32) -> (i32, i32) {
    %c0_i32 = arith.constant 0 : i32
    %c0_i32_0 = arith.constant 0 : i32
    return %arg0, %c0_i32 : i32, i32
  }
  func.func @transform_1(%arg0: i32, %arg1: i32) -> (i32, i32) {
    %c0_i32 = arith.constant 0 : i32
    %c0_i32_0 = arith.constant 0 : i32
    return %arg1, %c0_i32 : i32, i32
  }
  func.func @transform_2(%arg0: i32, %arg1: i32) -> (i32, i32) {
    %c0_i32 = arith.constant 0 : i32
    return %arg0, %arg1 : i32, i32
  }
}

</mosaic_0001>

<llo_original>
// kernel: tpu_custom_call.1
$region0: #{tpu_custom_call.1}
  #allocation0 [shape = 'u32[]', space=smem, size = 0x4, offset = 0x4, fixed_abs, tag = 'smem constant byte address 0x4 - core index']
  #allocation1 [shape = 'u32[72,128]{1,0:T(1,128)}', space=vmem, size = 0x9000, scoped, tag = 'internal scratch']
  %s0 = inlined_call_operand.vmem [shape: f32[16,32], index: 0, kind: input, shape index: {}]
  %s1 = inlined_call_operand.vmem [shape: f32[64,32], index: 1, kind: input, shape index: {}]
  %s2 = inlined_call_operand.hbm [shape: f32[16,64], index: 2, kind: output, shape index: {}]
  %s3 = sld [smem:[#allocation0]]
  $region18: #{tpu_custom_call.1} parent=0
    _
  %s5 = ssub.s32 1, %s3
  %s6 = scalar_select 0, %s5, %s3
  $region1: #{tpu_custom_call.1} parent=0
    #allocation2 [shape = 'u8[8192]{0}', space=vmem, size = 0x2000, scoped, tag = 'output window, operand 0, single buffered']
    #allocation3 [shape = 's32[1]{0}', space=sflag, size = 0x4, scoped, tag = 'scoped memory for tpu_custom_call.1']
    %7 = vsyncpa [#allocation3], 0
    // Predicated region
    $region2: #{tpu_custom_call.1} parent=1 // pred_check
      _
    $region3: #{tpu_custom_call.1} parent=1 // pred_check_branch
      %9 = sbr.rel (0) target = $region5
    $region4: #{tpu_custom_call.1} parent=1 // pred_region
      _
    $region5: #{tpu_custom_call.1} parent=1 // pred_fallthru
      _
    // Predicated region
    $region6: #{tpu_custom_call.1} parent=1 // pred_check
      _
    $region7: #{tpu_custom_call.1} parent=1 // pred_check_branch
      %11 = sbr.rel (0) target = $region9
    $region8: #{tpu_custom_call.1} parent=1 // pred_region
      _
    $region9: #{tpu_custom_call.1} parent=1 // pred_fallthru
      _
    %v12 = vld [vmem:[%s0] sm:$0xff]
    %v13 = vld [vmem:[%s0 + $0x8] sm:$0xff]
    %v14 = vld [vmem:[%s1] sm:$0xff]
    %v15 = vld [vmem:[%s1 + $0x8] sm:$0xff]
    %v16 = vld [vmem:[%s1 + $0x10] sm:$0xff]
    %v17 = vld [vmem:[%s1 + $0x18] sm:$0xff]
    %v18 = vld [vmem:[%s1 + $0x20] sm:$0xff]
    %v19 = vld [vmem:[%s1 + $0x28] sm:$0xff]
    %v20 = vld [vmem:[%s1 + $0x30] sm:$0xff]
    %v21 = vld [vmem:[%s1 + $0x38] sm:$0xff]
    %vm22 = vcmask 261120
    %v24 = vsel %vm22, %v12, 0
    %v27 = vsel %vm22, %v13, 0
    %v30 = vsel %vm22, %v14, 0
    %v33 = vsel %vm22, %v15, 0
    %v36 = vsel %vm22, %v16, 0
    %v39 = vsel %vm22, %v17, 0
    %v42 = vsel %vm22, %v18, 0
    %v45 = vsel %vm22, %v19, 0
    %v48 = vsel %vm22, %v20, 0
    %v51 = vsel %vm22, %v21, 0
    %53 = vmatpush.xpose.msra.mxu0 0.0
    %54 = vmatpush.xpose.msra.mxu0 0.0
    %55 = vmatpush.xpose.msra.mxu0 0.0
    %56 = vmatpush.xpose.msra.mxu0 0.0
    %57 = vmatpush.xpose.msra.mxu0 0.0
    %58 = vmatpush.xpose.msra.mxu0 0.0
    %59 = vmatpush.xpose.msra.mxu0 0.0
    %60 = vmatpush.xpose.msra.mxu0 0.0
    %61 = vmatpush.xpose.msra.mxu0 %v51
    %62 = vmatpush.xpose.msra.mxu0 %v48
    %63 = vmatpush.xpose.msra.mxu0 %v45
    %64 = vmatpush.xpose.msra.mxu0 %v42
    %65 = vmatpush.xpose.msra.mxu0 %v39
    %66 = vmatpush.xpose.msra.mxu0 %v36
    %67 = vmatpush.xpose.msra.mxu0 %v33
    %68 = vmatpush.xpose.msra.mxu0 %v30
    %69 = vmatmul.f32.gmra.mxu0 %v24
    %v70 = vpop.f32.mrf.mxu0
    %v71 = vadd.f32 0.0, %v70
    %72 = vmatmul.f32.gmra.mxu0 %v27
    %v73 = vpop.f32.mrf.mxu0
    %v74 = vadd.f32 0.0, %v73
    %75 = vdwg.mxu0
    %vm76 = vcmask 523264
    %77 = vst.msk [vmem:[#allocation2] sm:$0xff] %vm76, %v71
    %78 = vst.msk [vmem:[#allocation2 + $0x8] sm:$0xff] %vm76, %v74
    // Predicated region
    $region10: #{tpu_custom_call.1} parent=1 // pred_check
      _
    $region11: #{tpu_custom_call.1} parent=1 // pred_check_branch
      %80 = sbr.rel (0) target = $region13
    $region12: #{tpu_custom_call.1} parent=1 // pred_region
      %82 = vsyncadd [#allocation3], 0
      %s83 = sshll.u32 [#allocation2], 4
      %s84 = int_to_ptr.vmem [resolvable:$true] %s83
      %s85 = sshll.u32 %s2, 4
      %s86 = int_to_ptr.hbm [resolvable:$true] %s85
      %91 = dma.vmem_to_hbm [thread:$0]  %s84, 256, %s86, [#allocation3], 128, 128, 8
    $region13: #{tpu_custom_call.1} parent=1 // pred_fallthru
      _
    // Predicated region
    $region14: #{tpu_custom_call.1} parent=1 // pred_check
      _
    $region15: #{tpu_custom_call.1} parent=1 // pred_check_branch
      %93 = sbr.rel (0) target = $region17
    $region16: #{tpu_custom_call.1} parent=1 // pred_region
      %95 = dma.done [#allocation3], 256
    $region17: #{tpu_custom_call.1} parent=1 // pred_fallthru
      _
    %96 = vsyncpa [#allocation3], 1

</llo_original>
